<compile_context>
chip_gen: v6e
topology: v6e:2x2x1
jax: 0.10.0
libtpu: 0.0.40
codegen_flags: <defaults>
</compile_context>

<pallas_src>
import functools
import math

import jax
import jax.numpy as jnp
from jax.experimental import pallas as pl
from jax.experimental.pallas import tpu as pltpu

_VMEM = pl.BlockSpec(memory_space=pltpu.MemorySpace.VMEM)


def _conv_block_kernel(x_ref, w_ref, p_ref, o_ref, xpad_ref, *, pad_l, eps):
    """Conv1d(k, stride=1, 'same') + BatchNorm1d (training stats) + ReLU.

    x_ref    : (N, C_in, L)        input, NCL layout (mxu dtype)
    w_ref    : (K, C_out, C_in)    tap-major conv weights (mxu dtype)
    p_ref    : (2, C_out, 1)       packed [bn gamma, bn beta] (f32)
    o_ref    : (N, C_out, L)       output (f32)
    xpad_ref : (N, C_in, L+K-1)    VMEM scratch for the 'same'-padded input
    """
    N, C_in, L = x_ref.shape
    K = w_ref.shape[0]
    C_out = o_ref.shape[1]
    Lpad = xpad_ref.shape[-1]
    pad_r = Lpad - L - pad_l

    # ---- 'same' zero padding built ONCE in VMEM (no jnp.concatenate) --------
    if pad_l:
        xpad_ref[:, :, :pad_l] = jnp.zeros((N, C_in, pad_l), xpad_ref.dtype)
    if pad_r:
        xpad_ref[:, :, pad_l + L:] = jnp.zeros((N, C_in, pad_r), xpad_ref.dtype)
    xpad_ref[:, :, pad_l:pad_l + L] = x_ref[...]

    # ---- conv = K accumulate-matmuls over shifted views of the scratch ------
    # Weight broadcast (for the batched matmul) hoisted out of the tap loop;
    # JAX does not CSE broadcast_in_dim.
    w_b = jnp.broadcast_to(w_ref[...][:, None], (K, N, C_out, C_in))
    acc = jnp.zeros((N, C_out, L), jnp.float32)
    for t in range(K):                         # K is small & static -> unrolled
        x_t = xpad_ref[:, :, t:t + L]          # (N, C_in, L) shifted view
        acc = acc + jnp.einsum('noc,ncl->nol', w_b[t], x_t,
                               preferred_element_type=jnp.float32)

    # NOTE: the Conv1d bias is intentionally NOT added.  Training-mode
    # BatchNorm subtracts the per-channel mean right after, so a per-channel
    # constant shift cancels exactly (up to rounding).  It must be restored if
    # BN is ever run in eval mode with running statistics.

    # ---- BatchNorm1d (training stats): two independent reductions -----------
    inv_cnt = 1.0 / float(N * L)
    s1 = jnp.sum(acc, axis=(0, 2), keepdims=True)            # (1, C_out, 1)
    s2 = jnp.sum(acc * acc, axis=(0, 2), keepdims=True)      # (1, C_out, 1)
    mean = s1 * inv_cnt
    var = jnp.maximum(s2 * inv_cnt - mean * mean, 0.0)       # guard cancellation
    gamma = p_ref[0]                                         # (C_out, 1)
    beta = p_ref[1]                                          # (C_out, 1)
    scale = gamma * jax.lax.rsqrt(var + eps)                 # rsqrt -> EUP slot
    shift = beta - mean * scale

    # ---- normalize + ReLU: 2 VPU ops/elem, one full-tensor store ------------
    o_ref[...] = jnp.maximum(acc * scale + shift, 0.0).astype(o_ref.dtype)


def conv_block(x, weight, bias, gamma, beta, *, stride=1, padding='same',
               eps=1e-5, mxu_dtype=jnp.float32):
    """ConvBlock.forward.  `weight` is in the PyTorch Conv1d layout (C_out, C_in, K).

    `bias` is accepted for API parity but is mathematically cancelled by the
    training-mode BatchNorm that follows, so it is not used in the kernel.
    """
    if padding != 'same' or stride != 1:
        # PyTorch itself only allows padding='same' together with stride=1.
        raise NotImplementedError("ConvBlock uses padding='same' (=> stride must be 1)")
    del bias  # cancelled exactly by the BN mean subtraction (see kernel note)

    N, C_in, L = x.shape
    C_out, c_in_w, K = weight.shape
    assert c_in_w == C_in
    pad_l = (K - 1) // 2            # PyTorch puts the extra pad on the right
    Lpad = L + K - 1

    # Tap-major weights (K, C_out, C_in); cast x/w to the MXU dtype (bf16 on
    # v6e/v7x halves DMA + scratch bytes); BN math stays f32 inside the kernel.
    w_k = jnp.transpose(weight, (2, 0, 1)).astype(mxu_dtype)
    params = jnp.stack([gamma, beta]).reshape(2, C_out, 1).astype(jnp.float32)

    kern = functools.partial(_conv_block_kernel, pad_l=pad_l, eps=eps)
    return pl.pallas_call(
        kern,
        out_shape=jax.ShapeDtypeStruct((N, C_out, L), jnp.float32),
        in_specs=[_VMEM, _VMEM, _VMEM],
        out_specs=_VMEM,
        scratch_shapes=[pltpu.VMEM((N, C_in, Lpad), mxu_dtype)],
    )(x.astype(mxu_dtype), w_k, params)


class ConvBlockPallas:
    """Pallas equivalent of ConvBlock (Conv1d 'same' -> BatchNorm1d -> ReLU)."""

    def __init__(self, in_ch, out_ch, kernel, stride, padding='same', *, key,
                 mxu_dtype=jnp.float32):
        kw, kb = jax.random.split(key)
        bound = 1.0 / math.sqrt(in_ch * kernel)        # PyTorch Conv1d default init
        self.weight = jax.random.uniform(kw, (out_ch, in_ch, kernel),
                                         jnp.float32, -bound, bound)
        self.bias = jax.random.uniform(kb, (out_ch,), jnp.float32, -bound, bound)
        self.gamma = jnp.ones((out_ch,), jnp.float32)   # BatchNorm1d.weight
        self.beta = jnp.zeros((out_ch,), jnp.float32)   # BatchNorm1d.bias
        self.kernel, self.stride, self.padding = kernel, stride, padding
        self.mxu_dtype = mxu_dtype

    def __call__(self, x):
        return conv_block(x, self.weight, self.bias, self.gamma, self.beta,
                          stride=self.stride, padding=self.padding,
                          mxu_dtype=self.mxu_dtype)


if __name__ == "__main__":
    N, C_in, C_out, L, K = 2, 4, 8, 16, 5

    key = jax.random.PRNGKey(0)
    kx, kp = jax.random.split(key)
    x = jax.random.normal(kx, (N, C_in, L), jnp.float32)

    block = ConvBlockPallas(C_in, C_out, kernel=K, stride=1, padding='same', key=kp)
    # Use non-trivial BN affine params so gamma/beta handling is actually tested.
    kg, kb2 = jax.random.split(jax.random.PRNGKey(1))
    block.gamma = 1.0 + 0.1 * jax.random.normal(kg, (C_out,), jnp.float32)
    block.beta = 0.1 * jax.random.normal(kb2, (C_out,), jnp.float32)

    out = jax.block_until_ready(block(x))
    assert out.shape == (N, C_out, L), out.shape
    assert bool(jnp.all(jnp.isfinite(out)))

    # Pure-JAX/XLA reference of the same forward pass (includes the conv bias;
    # the kernel drops it — training-mode BN cancels it exactly).
    def reference(x, w, b, g, bt, eps=1e-5):
        kk = w.shape[-1]
        pl_, pr_ = (kk - 1) // 2, (kk - 1) - (kk - 1) // 2
        xp = jnp.pad(x, ((0, 0), (0, 0), (pl_, pr_)))
        y = jax.lax.conv_general_dilated(
            xp, w, window_strides=(1,), padding='VALID',
            dimension_numbers=('NCH', 'OIH', 'NCH'),
            precision=jax.lax.Precision.HIGHEST)
        y = y + b[None, :, None]
        mean = jnp.mean(y, axis=(0, 2), keepdims=True)
        var = jnp.mean((y - mean) ** 2, axis=(0, 2), keepdims=True)
        y = (y - mean) * jax.lax.rsqrt(var + eps)
        y = y * g[None, :, None] + bt[None, :, None]
        return jnp.maximum(y, 0.0)

    ref = reference(x, block.weight, block.bias, block.gamma, block.beta)
    err = float(jnp.max(jnp.abs(out - ref)))
    assert err < 1e-4, f"f32 path mismatch vs reference: max abs err {err}"

    # bf16 MXU path (v6e/v7x perf feedback): f32 accumulation, looser tolerance.
    out_bf16 = jax.block_until_ready(
        conv_block(x, block.weight, block.bias, block.gamma, block.beta,
                   mxu_dtype=jnp.bfloat16))
    err_bf = float(jnp.max(jnp.abs(out_bf16 - ref)))
    assert err_bf < 5e-2, f"bf16 path mismatch vs reference: max abs err {err_bf}"

    print("KERNEL_OK")
</pallas_src>

<mosaic_0001>
module attributes {stable_mosaic.version = 11 : i64} {
  func.func @_conv_block_kernel(%arg0: memref<2x4x16xf32, #tpu.memory_space<vmem>>, %arg1: memref<5x8x4xf32, #tpu.memory_space<vmem>>, %arg2: memref<2x8x1xf32, #tpu.memory_space<vmem>>, %arg3: memref<2x8x16xf32, #tpu.memory_space<vmem>>, %arg4: memref<2x4x20xf32, #tpu.memory_space<vmem>>) attributes {dimension_semantics = [], scalar_prefetch = 0 : i64, scratch_operands = 1 : i64, tpu.core_type = #tpu.core_type<tc>} {
    %cst = arith.constant 0.000000e+00 : f32
    %0 = vector.broadcast %cst : f32 to vector<2x4x2xf32>
    %c0 = arith.constant 0 : index
    %c0_0 = arith.constant 0 : index
    %c0_1 = arith.constant 0 : index
    %1 = vector.load %arg4[%c0, %c0_0, %c0_1] : memref<2x4x20xf32, #tpu.memory_space<vmem>>, vector<2x4x2xf32>
    tpu.vector_store %arg4[%c0, %c0_0, %c0_1], %0 {strides = array<i32>} : memref<2x4x20xf32, #tpu.memory_space<vmem>>, vector<2x4x2xf32>,
    %cst_2 = arith.constant 0.000000e+00 : f32
    %2 = vector.broadcast %cst_2 : f32 to vector<2x4x2xf32>
    %c0_3 = arith.constant 0 : index
    %c0_4 = arith.constant 0 : index
    %c18 = arith.constant 18 : index
    %3 = vector.load %arg4[%c0_3, %c0_4, %c18] : memref<2x4x20xf32, #tpu.memory_space<vmem>>, vector<2x4x2xf32>
    tpu.vector_store %arg4[%c0_3, %c0_4, %c18], %2 {strides = array<i32>} : memref<2x4x20xf32, #tpu.memory_space<vmem>>, vector<2x4x2xf32>,
    %c0_5 = arith.constant 0 : index
    %c0_6 = arith.constant 0 : index
    %c0_7 = arith.constant 0 : index
    %4 = vector.load %arg0[%c0_5, %c0_6, %c0_7] : memref<2x4x16xf32, #tpu.memory_space<vmem>>, vector<2x4x16xf32>
    %c0_8 = arith.constant 0 : index
    %c0_9 = arith.constant 0 : index
    %c2 = arith.constant 2 : index
    %5 = vector.load %arg4[%c0_8, %c0_9, %c2] : memref<2x4x20xf32, #tpu.memory_space<vmem>>, vector<2x4x16xf32>
    tpu.vector_store %arg4[%c0_8, %c0_9, %c2], %4 {strides = array<i32>} : memref<2x4x20xf32, #tpu.memory_space<vmem>>, vector<2x4x16xf32>,
    %c0_10 = arith.constant 0 : index
    %c0_11 = arith.constant 0 : index
    %c0_12 = arith.constant 0 : index
    %6 = vector.load %arg1[%c0_10, %c0_11, %c0_12] : memref<5x8x4xf32, #tpu.memory_space<vmem>>, vector<5x8x4xf32>
    %7 = vector.shape_cast %6 : vector<5x8x4xf32> to vector<5x1x8x4xf32>
    %8 = vector.shape_cast %7 : vector<5x1x8x4xf32> to vector<5x1x8x4xf32>
    %9 = vector.broadcast %8 : vector<5x1x8x4xf32> to vector<5x2x8x4xf32>
    %cst_13 = arith.constant 0.000000e+00 : f32
    %10 = vector.broadcast %cst_13 : f32 to vector<2x8x16xf32>
    %c0_14 = arith.constant 0 : index
    %c0_15 = arith.constant 0 : index
    %c0_16 = arith.constant 0 : index
    %11 = vector.load %arg4[%c0_14, %c0_15, %c0_16] : memref<2x4x20xf32, #tpu.memory_space<vmem>>, vector<2x4x16xf32>
    %12 = vector.extract_strided_slice %9 {offsets = [0, 0, 0, 0], sizes = [1, 2, 8, 4], strides = [1, 1, 1, 1]} : vector<5x2x8x4xf32> to vector<1x2x8x4xf32>
    %13 = vector.shape_cast %12 : vector<1x2x8x4xf32> to vector<2x8x4xf32>
    "tpu.trace_start"() <{level = 10 : i32, message = "noc,ncl->nol"}> : () -> ()
    %cst_17 = arith.constant dense<0.000000e+00> : vector<2x8x16xf32>
    %14 = tpu.matmul %13, %11, %cst_17 {dimension_numbers = #tpu.dot_dimension_numbers<[2], [1], [1], [2], [0, 0, 0, 1, 1, 2], [0], [0]>} : vector<2x8x4xf32>, vector<2x4x16xf32>, vector<2x8x16xf32> -> vector<2x8x16xf32>
    "tpu.trace_stop"() : () -> ()
    %15 = arith.addf %10, %14 : vector<2x8x16xf32>
    %c0_18 = arith.constant 0 : index
    %c0_19 = arith.constant 0 : index
    %c1 = arith.constant 1 : index
    %16 = vector.load %arg4[%c0_18, %c0_19, %c1] : memref<2x4x20xf32, #tpu.memory_space<vmem>>, vector<2x4x16xf32>
    %17 = vector.extract_strided_slice %9 {offsets = [1, 0, 0, 0], sizes = [1, 2, 8, 4], strides = [1, 1, 1, 1]} : vector<5x2x8x4xf32> to vector<1x2x8x4xf32>
    %18 = vector.shape_cast %17 : vector<1x2x8x4xf32> to vector<2x8x4xf32>
    "tpu.trace_start"() <{level = 10 : i32, message = "noc,ncl->nol"}> : () -> ()
    %cst_20 = arith.constant dense<0.000000e+00> : vector<2x8x16xf32>
    %19 = tpu.matmul %18, %16, %cst_20 {dimension_numbers = #tpu.dot_dimension_numbers<[2], [1], [1], [2], [0, 0, 0, 1, 1, 2], [0], [0]>} : vector<2x8x4xf32>, vector<2x4x16xf32>, vector<2x8x16xf32> -> vector<2x8x16xf32>
    "tpu.trace_stop"() : () -> ()
    %20 = arith.addf %15, %19 : vector<2x8x16xf32>
    %c0_21 = arith.constant 0 : index
    %c0_22 = arith.constant 0 : index
    %c2_23 = arith.constant 2 : index
    %21 = vector.load %arg4[%c0_21, %c0_22, %c2_23] : memref<2x4x20xf32, #tpu.memory_space<vmem>>, vector<2x4x16xf32>
    %22 = vector.extract_strided_slice %9 {offsets = [2, 0, 0, 0], sizes = [1, 2, 8, 4], strides = [1, 1, 1, 1]} : vector<5x2x8x4xf32> to vector<1x2x8x4xf32>
    %23 = vector.shape_cast %22 : vector<1x2x8x4xf32> to vector<2x8x4xf32>
    "tpu.trace_start"() <{level = 10 : i32, message = "noc,ncl->nol"}> : () -> ()
    %cst_24 = arith.constant dense<0.000000e+00> : vector<2x8x16xf32>
    %24 = tpu.matmul %23, %21, %cst_24 {dimension_numbers = #tpu.dot_dimension_numbers<[2], [1], [1], [2], [0, 0, 0, 1, 1, 2], [0], [0]>} : vector<2x8x4xf32>, vector<2x4x16xf32>, vector<2x8x16xf32> -> vector<2x8x16xf32>
    "tpu.trace_stop"() : () -> ()
    %25 = arith.addf %20, %24 : vector<2x8x16xf32>
    %c0_25 = arith.constant 0 : index
    %c0_26 = arith.constant 0 : index
    %c3 = arith.constant 3 : index
    %26 = vector.load %arg4[%c0_25, %c0_26, %c3] : memref<2x4x20xf32, #tpu.memory_space<vmem>>, vector<2x4x16xf32>
    %27 = vector.extract_strided_slice %9 {offsets = [3, 0, 0, 0], sizes = [1, 2, 8, 4], strides = [1, 1, 1, 1]} : vector<5x2x8x4xf32> to vector<1x2x8x4xf32>
    %28 = vector.shape_cast %27 : vector<1x2x8x4xf32> to vector<2x8x4xf32>
    "tpu.trace_start"() <{level = 10 : i32, message = "noc,ncl->nol"}> : () -> ()
    %cst_27 = arith.constant dense<0.000000e+00> : vector<2x8x16xf32>
    %29 = tpu.matmul %28, %26, %cst_27 {dimension_numbers = #tpu.dot_dimension_numbers<[2], [1], [1], [2], [0, 0, 0, 1, 1, 2], [0], [0]>} : vector<2x8x4xf32>, vector<2x4x16xf32>, vector<2x8x16xf32> -> vector<2x8x16xf32>
    "tpu.trace_stop"() : () -> ()
    %30 = arith.addf %25, %29 : vector<2x8x16xf32>
    %c0_28 = arith.constant 0 : index
    %c0_29 = arith.constant 0 : index
    %c4 = arith.constant 4 : index
    %31 = vector.load %arg4[%c0_28, %c0_29, %c4] : memref<2x4x20xf32, #tpu.memory_space<vmem>>, vector<2x4x16xf32>
    %32 = vector.extract_strided_slice %9 {offsets = [4, 0, 0, 0], sizes = [1, 2, 8, 4], strides = [1, 1, 1, 1]} : vector<5x2x8x4xf32> to vector<1x2x8x4xf32>
    %33 = vector.shape_cast %32 : vector<1x2x8x4xf32> to vector<2x8x4xf32>
    "tpu.trace_start"() <{level = 10 : i32, message = "noc,ncl->nol"}> : () -> ()
    %cst_30 = arith.constant dense<0.000000e+00> : vector<2x8x16xf32>
    %34 = tpu.matmul %33, %31, %cst_30 {dimension_numbers = #tpu.dot_dimension_numbers<[2], [1], [1], [2], [0, 0, 0, 1, 1, 2], [0], [0]>} : vector<2x8x4xf32>, vector<2x4x16xf32>, vector<2x8x16xf32> -> vector<2x8x16xf32>
    "tpu.trace_stop"() : () -> ()
    %35 = arith.addf %30, %34 : vector<2x8x16xf32>
    %cst_31 = arith.constant dense<0.000000e+00> : vector<8xf32>
    %36 = vector.multi_reduction <add>, %35, %cst_31 [0, 2] : vector<2x8x16xf32> to vector<8xf32>
    %37 = vector.shape_cast %36 : vector<8xf32> to vector<1x8x1xf32>
    %38 = arith.mulf %35, %35 : vector<2x8x16xf32>
    %cst_32 = arith.constant dense<0.000000e+00> : vector<8xf32>
    %39 = vector.multi_reduction <add>, %38, %cst_32 [0, 2] : vector<2x8x16xf32> to vector<8xf32>
    %40 = vector.shape_cast %39 : vector<8xf32> to vector<1x8x1xf32>
    %cst_33 = arith.constant 3.125000e-02 : f32
    %41 = vector.broadcast %cst_33 : f32 to vector<1x8x1xf32>
    %42 = arith.mulf %37, %41 : vector<1x8x1xf32>
    %cst_34 = arith.constant 3.125000e-02 : f32
    %43 = vector.broadcast %cst_34 : f32 to vector<1x8x1xf32>
    %44 = arith.mulf %40, %43 : vector<1x8x1xf32>
    %45 = arith.mulf %42, %42 : vector<1x8x1xf32>
    %46 = arith.subf %44, %45 : vector<1x8x1xf32>
    %cst_35 = arith.constant 0.000000e+00 : f32
    %47 = vector.broadcast %cst_35 : f32 to vector<1x8x1xf32>
    %48 = arith.maximumf %46, %47 : vector<1x8x1xf32>
    %c0_36 = arith.constant 0 : index
    %c0_37 = arith.constant 0 : index
    %c0_38 = arith.constant 0 : index
    %49 = vector.load %arg2[%c0_36, %c0_37, %c0_38] : memref<2x8x1xf32, #tpu.memory_space<vmem>>, vector<1x8x1xf32>
    %50 = vector.shape_cast %49 : vector<1x8x1xf32> to vector<8x1xf32>
    %c1_39 = arith.constant 1 : index
    %c0_40 = arith.constant 0 : index
    %c0_41 = arith.constant 0 : index
    %51 = vector.load %arg2[%c1_39, %c0_40, %c0_41] : memref<2x8x1xf32, #tpu.memory_space<vmem>>, vector<1x8x1xf32>
    %52 = vector.shape_cast %51 : vector<1x8x1xf32> to vector<8x1xf32>
    %cst_42 = arith.constant 9.99999974E-6 : f32
    %53 = vector.broadcast %cst_42 : f32 to vector<1x8x1xf32>
    %54 = arith.addf %48, %53 : vector<1x8x1xf32>
    %55 = math.rsqrt %54 : vector<1x8x1xf32>
    %56 = vector.shape_cast %50 : vector<8x1xf32> to vector<1x8x1xf32>
    %57 = arith.mulf %56, %55 : vector<1x8x1xf32>
    %58 = arith.mulf %42, %57 : vector<1x8x1xf32>
    %59 = vector.shape_cast %52 : vector<8x1xf32> to vector<1x8x1xf32>
    %60 = arith.subf %59, %58 : vector<1x8x1xf32>
    %61 = vector.broadcast %57 : vector<1x8x1xf32> to vector<2x8x16xf32>
    %62 = arith.mulf %35, %61 : vector<2x8x16xf32>
    %63 = vector.broadcast %60 : vector<1x8x1xf32> to vector<2x8x16xf32>
    %64 = arith.addf %62, %63 : vector<2x8x16xf32>
    %cst_43 = arith.constant 0.000000e+00 : f32
    %65 = vector.broadcast %cst_43 : f32 to vector<2x8x16xf32>
    %66 = arith.maximumf %64, %65 : vector<2x8x16xf32>
    %c0_44 = arith.constant 0 : index
    %c0_45 = arith.constant 0 : index
    %c0_46 = arith.constant 0 : index
    %67 = vector.load %arg3[%c0_44, %c0_45, %c0_46] : memref<2x8x16xf32, #tpu.memory_space<vmem>>, vector<2x8x16xf32>
    tpu.vector_store %arg3[%c0_44, %c0_45, %c0_46], %66 {strides = array<i32>} : memref<2x8x16xf32, #tpu.memory_space<vmem>>, vector<2x8x16xf32>,
    return
  }
}

</mosaic_0001>

<llo_original>
// kernel: tpu_custom_call.1
$region0: #{tpu_custom_call.1}
  #allocation0 [shape = 'u32[]', space=smem, size = 0x4, offset = 0x4, fixed_abs, tag = 'smem constant byte address 0x4 - core index']
  #allocation1 [shape = 'u32[144,128]{1,0:T(1,128)}', space=vmem, size = 0x12000, scoped, tag = 'internal scratch']
  #allocation2 [shape = 'f32[2,4,20]{2,1,0:T(4,128)}', space=vmem, size = 0x1000, scoped, tag = 'scratch operand']
  %s0 = inlined_call_operand.vmem [shape: f32[2,4,16], index: 0, kind: input, shape index: {}]
  %s1 = inlined_call_operand.vmem [shape: f32[5,8,4], index: 1, kind: input, shape index: {}]
  %s2 = inlined_call_operand.vmem [shape: f32[2,8,1], index: 2, kind: input, shape index: {}]
  %s3 = inlined_call_operand.hbm [shape: f32[2,8,16], index: 3, kind: output, shape index: {}]
  %s4 = sld [smem:[#allocation0]]
  $region22: #{tpu_custom_call.1} parent=0
    _
  %s6 = ssub.s32 1, %s4
  %s7 = scalar_select 0, %s6, %s4
  $region1: #{tpu_custom_call.1} parent=0
    #allocation3 [shape = 'u8[8192]{0}', space=vmem, size = 0x2000, scoped, tag = 'output window, operand 0, single buffered']
    #allocation4 [shape = 's32[1]{0}', space=sflag, size = 0x4, scoped, tag = 'scoped memory for tpu_custom_call.1']
    %8 = vsyncpa [#allocation4], 0
    // Predicated region
    $region2: #{tpu_custom_call.1} parent=1 // pred_check
      _
    $region3: #{tpu_custom_call.1} parent=1 // pred_check_branch
      %10 = sbr.rel (0) target = $region5
    $region4: #{tpu_custom_call.1} parent=1 // pred_region
      _
    $region5: #{tpu_custom_call.1} parent=1 // pred_fallthru
      _
    // Predicated region
    $region6: #{tpu_custom_call.1} parent=1 // pred_check
      _
    $region7: #{tpu_custom_call.1} parent=1 // pred_check_branch
      %12 = sbr.rel (0) target = $region9
    $region8: #{tpu_custom_call.1} parent=1 // pred_region
      _
    $region9: #{tpu_custom_call.1} parent=1 // pred_fallthru
      _
    // Predicated region
    $region10: #{tpu_custom_call.1} parent=1 // pred_check
      _
    $region11: #{tpu_custom_call.1} parent=1 // pred_check_branch
      %14 = sbr.rel (0) target = $region13
    $region12: #{tpu_custom_call.1} parent=1 // pred_region
      _
    $region13: #{tpu_custom_call.1} parent=1 // pred_fallthru
      _
    %vm15 = vcmask 11264
    %16 = vst.msk [vmem:[#allocation2] sm:$0xf] %vm15, 0.0
    %17 = vst.msk [vmem:[#allocation2 + $0x4] sm:$0xf] %vm15, 0.0
    %vm18 = vcmask 158864
    %19 = vst.msk [vmem:[#allocation2] sm:$0xf] %vm18, 0.0
    %20 = vst.msk [vmem:[#allocation2 + $0x4] sm:$0xf] %vm18, 0.0
    %v21 = vld [vmem:[%s0] sm:$0xf]
    %v22 = vld [vmem:[%s0 + $0x4] sm:$0xf]
    %25 = vrot.lane.b32.xlu0 %v21, 2
    %v26 = vpop.permute.xlu0 %25
    %27 = vrot.lane.b32.xlu0 %v22, 2
    %v28 = vpop.permute.xlu0 %27
    %vm31 = vcmask 142352
    %32 = vst.msk [vmem:[#allocation2] sm:$0xf] %vm31, %v26
    %33 = vst.msk [vmem:[#allocation2 + $0x4] sm:$0xf] %vm31, %v28
    %v34 = vld [vmem:[%s1] sm:$0xff]
    %v35 = vld [vmem:[%s1 + $0x8] sm:$0xff]
    %v36 = vld [vmem:[%s1 + $0x10] sm:$0xff]
    %v37 = vld [vmem:[%s1 + $0x18] sm:$0xff]
    %v38 = vld [vmem:[%s1 + $0x20] sm:$0xff]
    %v39 = vld [vmem:[#allocation2] sm:$0xf]
    %v40 = vld [vmem:[#allocation2 + $0x4] sm:$0xf]
    %v41 = vld [vmem:[#allocation2] sm:$0xf]
    %v42 = vld [vmem:[#allocation2 + $0x4] sm:$0xf]
    %44 = vrot.lane.b32.xlu0 %v41, 127
    %v45 = vpop.permute.xlu0 %44
    %vm46 = vcmask 31744
    %v48 = vsel %vm46, %v35, 0
    %vm50 = vcmask 1043456
    %v51 = vsel %vm50, %v45, 0
    %53 = vmatprep.subr.mxu0 0.0
    %54 = vmatpush1.msra.mxu0 0.0
    %55 = vmatprep.subr.mxu0 0.0
    %56 = vmatpush1.msra.mxu0 0.0
    %57 = vmatprep.subr.mxu0 0.0
    %58 = vmatpush1.msra.mxu0 0.0
    %59 = vmatprep.subr.mxu0 0.0
    %60 = vmatpush1.msra.mxu0 0.0
    %61 = vmatprep.subr.mxu0 0.0
    %62 = vmatpush1.msra.mxu0 0.0
    %63 = vmatprep.subr.mxu0 0.0
    %64 = vmatpush1.msra.mxu0 0.0
    %65 = vmatprep.subr.mxu0 0.0
    %66 = vmatpush1.msra.mxu0 0.0
    %67 = vmatprep.subr.mxu0 0.0
    %68 = vmatpush1.msra.mxu0 0.0
    %69 = vmatprep.subr.mxu0 0.0
    %70 = vmatpush1.msra.mxu0 0.0
    %71 = vmatprep.subr.mxu0 0.0
    %72 = vmatpush1.msra.mxu0 0.0
    %73 = vmatprep.subr.mxu0 0.0
    %74 = vmatpush1.msra.mxu0 0.0
    %75 = vmatprep.subr.mxu0 0.0
    %76 = vmatpush1.msra.mxu0 0.0
    %77 = vmatprep.subr.mxu0 0.0
    %78 = vmatpush1.msra.mxu0 0.0
    %79 = vmatprep.subr.mxu0 0.0
    %80 = vmatpush1.msra.mxu0 0.0
    %81 = vmatprep.subr.mxu0 0.0
    %82 = vmatpush1.msra.mxu0 0.0
    %83 = vmatprep.subr.mxu0 0.0
    %84 = vmatpush1.msra.mxu0 %v51
    %85 = vmatprep.subr.mxu0 0.0
    %86 = vmatpush2.msra.mxu0 0.0
    %87 = vmatprep.subr.mxu0 0.0
    %88 = vmatpush2.msra.mxu0 0.0
    %89 = vmatprep.subr.mxu0 0.0
    %90 = vmatpush2.msra.mxu0 0.0
    %91 = vmatprep.subr.mxu0 0.0
    %92 = vmatpush2.msra.mxu0 0.0
    %93 = vmatprep.subr.mxu0 0.0
    %94 = vmatpush2.msra.mxu0 0.0
    %95 = vmatprep.subr.mxu0 0.0
    %96 = vmatpush2.msra.mxu0 0.0
    %97 = vmatprep.subr.mxu0 0.0
    %98 = vmatpush2.msra.mxu0 0.0
    %99 = vmatprep.subr.mxu0 0.0
    %100 = vmatpush2.msra.mxu0 0.0
    %101 = vmatprep.subr.mxu0 0.0
    %102 = vmatpush2.msra.mxu0 0.0
    %103 = vmatprep.subr.mxu0 0.0
    %104 = vmatpush2.msra.mxu0 0.0
    %105 = vmatprep.subr.mxu0 0.0
    %106 = vmatpush2.msra.mxu0 0.0
    %107 = vmatprep.subr.mxu0 0.0
    %108 = vmatpush2.msra.mxu0 0.0
    %109 = vmatprep.subr.mxu0 0.0
    %110 = vmatpush2.msra.mxu0 0.0
    %111 = vmatprep.subr.mxu0 0.0
    %112 = vmatpush2.msra.mxu0 0.0
    %113 = vmatprep.subr.mxu0 0.0
    %114 = vmatpush2.msra.mxu0 0.0
    %115 = vmatprep.subr.mxu0 0.0
    %116 = vmatpush2.msra.mxu0 0.0
    %117 = vmatprep.mubr.f32.mxu0 0.0
    %118 = vmatmul.mubr.f32.gmra.mxu0 %v48
    %v119 = vpop.f32.mrf.mxu0
    %v120 = vadd.f32 0.0, %v119
    %v121 = vpop.f32.mrf.mxu0
    %122 = vdwg.mxu0
    %124 = vrot.lane.b32.xlu0 %v42, 127
    %v125 = vpop.permute.xlu0 %124
    %v126 = vsel %vm50, %v125, 0
    %128 = vmatprep.subr.mxu0 0.0
    %129 = vmatpush1.msra.mxu0 0.0
    %130 = vmatprep.subr.mxu0 0.0
    %131 = vmatpush1.msra.mxu0 0.0
    %132 = vmatprep.subr.mxu0 0.0
    %133 = vmatpush1.msra.mxu0 0.0
    %134 = vmatprep.subr.mxu0 0.0
    %135 = vmatpush1.msra.mxu0 0.0
    %136 = vmatprep.subr.mxu0 0.0
    %137 = vmatpush1.msra.mxu0 0.0
    %138 = vmatprep.subr.mxu0 0.0
    %139 = vmatpush1.msra.mxu0 0.0
    %140 = vmatprep.subr.mxu0 0.0
    %141 = vmatpush1.msra.mxu0 0.0
    %142 = vmatprep.subr.mxu0 0.0
    %143 = vmatpush1.msra.mxu0 0.0
    %144 = vmatprep.subr.mxu0 0.0
    %145 = vmatpush1.msra.mxu0 0.0
    %146 = vmatprep.subr.mxu0 0.0
    %147 = vmatpush1.msra.mxu0 0.0
    %148 = vmatprep.subr.mxu0 0.0
    %149 = vmatpush1.msra.mxu0 0.0
    %150 = vmatprep.subr.mxu0 0.0
    %151 = vmatpush1.msra.mxu0 0.0
    %152 = vmatprep.subr.mxu0 0.0
    %153 = vmatpush1.msra.mxu0 0.0
    %154 = vmatprep.subr.mxu0 0.0
    %155 = vmatpush1.msra.mxu0 0.0
    %156 = vmatprep.subr.mxu0 0.0
    %157 = vmatpush1.msra.mxu0 0.0
    %158 = vmatprep.subr.mxu0 0.0
    %159 = vmatpush1.msra.mxu0 %v126
    %160 = vmatprep.subr.mxu0 0.0
    %161 = vmatpush2.msra.mxu0 0.0
    %162 = vmatprep.subr.mxu0 0.0
    %163 = vmatpush2.msra.mxu0 0.0
    %164 = vmatprep.subr.mxu0 0.0
    %165 = vmatpush2.msra.mxu0 0.0
    %166 = vmatprep.subr.mxu0 0.0
    %167 = vmatpush2.msra.mxu0 0.0
    %168 = vmatprep.subr.mxu0 0.0
    %169 = vmatpush2.msra.mxu0 0.0
    %170 = vmatprep.subr.mxu0 0.0
    %171 = vmatpush2.msra.mxu0 0.0
    %172 = vmatprep.subr.mxu0 0.0
    %173 = vmatpush2.msra.mxu0 0.0
    %174 = vmatprep.subr.mxu0 0.0
    %175 = vmatpush2.msra.mxu0 0.0
    %176 = vmatprep.subr.mxu0 0.0
    %177 = vmatpush2.msra.mxu0 0.0
    %178 = vmatprep.subr.mxu0 0.0
    %179 = vmatpush2.msra.mxu0 0.0
    %180 = vmatprep.subr.mxu0 0.0
    %181 = vmatpush2.msra.mxu0 0.0
    %182 = vmatprep.subr.mxu0 0.0
    %183 = vmatpush2.msra.mxu0 0.0
    %184 = vmatprep.subr.mxu0 0.0
    %185 = vmatpush2.msra.mxu0 0.0
    %186 = vmatprep.subr.mxu0 0.0
    %187 = vmatpush2.msra.mxu0 0.0
    %188 = vmatprep.subr.mxu0 0.0
    %189 = vmatpush2.msra.mxu0 0.0
    %190 = vmatprep.subr.mxu0 0.0
    %191 = vmatpush2.msra.mxu0 0.0
    %192 = vmatprep.mubr.f32.mxu0 0.0
    %193 = vmatmul.mubr.f32.gmra.mxu0 %v48
    %v194 = vpop.f32.mrf.mxu0
    %v195 = vadd.f32 0.0, %v194
    %v196 = vpop.f32.mrf.mxu0
    %197 = vdwg.mxu0
    %v199 = vsel %vm46, %v34, 0
    %v202 = vsel %vm50, %v39, 0
    %204 = vmatprep.subr.mxu0 0.0
    %205 = vmatpush1.msra.mxu0 0.0
    %206 = vmatprep.subr.mxu0 0.0
    %207 = vmatpush1.msra.mxu0 0.0
    %208 = vmatprep.subr.mxu0 0.0
    %209 = vmatpush1.msra.mxu0 0.0
    %210 = vmatprep.subr.mxu0 0.0
    %211 = vmatpush1.msra.mxu0 0.0
    %212 = vmatprep.subr.mxu0 0.0
    %213 = vmatpush1.msra.mxu0 0.0
    %214 = vmatprep.subr.mxu0 0.0
    %215 = vmatpush1.msra.mxu0 0.0
    %216 = vmatprep.subr.mxu0 0.0
    %217 = vmatpush1.msra.mxu0 0.0
    %218 = vmatprep.subr.mxu0 0.0
    %219 = vmatpush1.msra.mxu0 0.0
    %220 = vmatprep.subr.mxu0 0.0
    %221 = vmatpush1.msra.mxu0 0.0
    %222 = vmatprep.subr.mxu0 0.0
    %223 = vmatpush1.msra.mxu0 0.0
    %224 = vmatprep.subr.mxu0 0.0
    %225 = vmatpush1.msra.mxu0 0.0
    %226 = vmatprep.subr.mxu0 0.0
    %227 = vmatpush1.msra.mxu0 0.0
    %228 = vmatprep.subr.mxu0 0.0
    %229 = vmatpush1.msra.mxu0 0.0
    %230 = vmatprep.subr.mxu0 0.0
    %231 = vmatpush1.msra.mxu0 0.0
    %232 = vmatprep.subr.mxu0 0.0
    %233 = vmatpush1.msra.mxu0 0.0
    %234 = vmatprep.subr.mxu0 0.0
    %235 = vmatpush1.msra.mxu0 %v202
    %236 = vmatprep.subr.mxu0 0.0
    %237 = vmatpush2.msra.mxu0 0.0
    %238 = vmatprep.subr.mxu0 0.0
    %239 = vmatpush2.msra.mxu0 0.0
    %240 = vmatprep.subr.mxu0 0.0
    %241 = vmatpush2.msra.mxu0 0.0
    %242 = vmatprep.subr.mxu0 0.0
    %243 = vmatpush2.msra.mxu0 0.0
    %244 = vmatprep.subr.mxu0 0.0
    %245 = vmatpush2.msra.mxu0 0.0
    %246 = vmatprep.subr.mxu0 0.0
    %247 = vmatpush2.msra.mxu0 0.0
    %248 = vmatprep.subr.mxu0 0.0
    %249 = vmatpush2.msra.mxu0 0.0
    %250 = vmatprep.subr.mxu0 0.0
    %251 = vmatpush2.msra.mxu0 0.0
    %252 = vmatprep.subr.mxu0 0.0
    %253 = vmatpush2.msra.mxu0 0.0
    %254 = vmatprep.subr.mxu0 0.0
    %255 = vmatpush2.msra.mxu0 0.0
    %256 = vmatprep.subr.mxu0 0.0
    %257 = vmatpush2.msra.mxu0 0.0
    %258 = vmatprep.subr.mxu0 0.0
    %259 = vmatpush2.msra.mxu0 0.0
    %260 = vmatprep.subr.mxu0 0.0
    %261 = vmatpush2.msra.mxu0 0.0
    %262 = vmatprep.subr.mxu0 0.0
    %263 = vmatpush2.msra.mxu0 0.0
    %264 = vmatprep.subr.mxu0 0.0
    %265 = vmatpush2.msra.mxu0 0.0
    %266 = vmatprep.subr.mxu0 0.0
    %267 = vmatpush2.msra.mxu0 0.0
    %268 = vmatprep.mubr.f32.mxu0 0.0
    %269 = vmatmul.mubr.f32.gmra.mxu0 %v199
    %v270 = vpop.f32.mrf.mxu0
    %v271 = vadd.f32 %v120, %v270
    %v272 = vpop.f32.mrf.mxu0
    %273 = vdwg.mxu0
    %v275 = vsel %vm50, %v40, 0
    %277 = vmatprep.subr.mxu0 0.0
    %278 = vmatpush1.msra.mxu0 0.0
    %279 = vmatprep.subr.mxu0 0.0
    %280 = vmatpush1.msra.mxu0 0.0
    %281 = vmatprep.subr.mxu0 0.0
    %282 = vmatpush1.msra.mxu0 0.0
    %283 = vmatprep.subr.mxu0 0.0
    %284 = vmatpush1.msra.mxu0 0.0
    %285 = vmatprep.subr.mxu0 0.0
    %286 = vmatpush1.msra.mxu0 0.0
    %287 = vmatprep.subr.mxu0 0.0
    %288 = vmatpush1.msra.mxu0 0.0
    %289 = vmatprep.subr.mxu0 0.0
    %290 = vmatpush1.msra.mxu0 0.0
    %291 = vmatprep.subr.mxu0 0.0
    %292 = vmatpush1.msra.mxu0 0.0
    %293 = vmatprep.subr.mxu0 0.0
    %294 = vmatpush1.msra.mxu0 0.0
    %295 = vmatprep.subr.mxu0 0.0
    %296 = vmatpush1.msra.mxu0 0.0
    %297 = vmatprep.subr.mxu0 0.0
    %298 = vmatpush1.msra.mxu0 0.0
    %299 = vmatprep.subr.mxu0 0.0
    %300 = vmatpush1.msra.mxu0 0.0
    %301 = vmatprep.subr.mxu0 0.0
    %302 = vmatpush1.msra.mxu0 0.0
    %303 = vmatprep.subr.mxu0 0.0
    %304 = vmatpush1.msra.mxu0 0.0
    %305 = vmatprep.subr.mxu0 0.0
    %306 = vmatpush1.msra.mxu0 0.0
    %307 = vmatprep.subr.mxu0 0.0
    %308 = vmatpush1.msra.mxu0 %v275
    %309 = vmatprep.subr.mxu0 0.0
    %310 = vmatpush2.msra.mxu0 0.0
    %311 = vmatprep.subr.mxu0 0.0
    %312 = vmatpush2.msra.mxu0 0.0
    %313 = vmatprep.subr.mxu0 0.0
    %314 = vmatpush2.msra.mxu0 0.0
    %315 = vmatprep.subr.mxu0 0.0
    %316 = vmatpush2.msra.mxu0 0.0
    %317 = vmatprep.subr.mxu0 0.0
    %318 = vmatpush2.msra.mxu0 0.0
    %319 = vmatprep.subr.mxu0 0.0
    %320 = vmatpush2.msra.mxu0 0.0
    %321 = vmatprep.subr.mxu0 0.0
    %322 = vmatpush2.msra.mxu0 0.0
    %323 = vmatprep.subr.mxu0 0.0
    %324 = vmatpush2.msra.mxu0 0.0
    %325 = vmatprep.subr.mxu0 0.0
    %326 = vmatpush2.msra.mxu0 0.0
    %327 = vmatprep.subr.mxu0 0.0
    %328 = vmatpush2.msra.mxu0 0.0
    %329 = vmatprep.subr.mxu0 0.0
    %330 = vmatpush2.msra.mxu0 0.0
    %331 = vmatprep.subr.mxu0 0.0
    %332 = vmatpush2.msra.mxu0 0.0
    %333 = vmatprep.subr.mxu0 0.0
    %334 = vmatpush2.msra.mxu0 0.0
    %335 = vmatprep.subr.mxu0 0.0
    %336 = vmatpush2.msra.mxu0 0.0
    %337 = vmatprep.subr.mxu0 0.0
    %338 = vmatpush2.msra.mxu0 0.0
    %339 = vmatprep.subr.mxu0 0.0
    %340 = vmatpush2.msra.mxu0 0.0
    %341 = vmatprep.mubr.f32.mxu0 0.0
    %342 = vmatmul.mubr.f32.gmra.mxu0 %v199
    %v343 = vpop.f32.mrf.mxu0
    %v344 = vadd.f32 %v195, %v343
    %v345 = vpop.f32.mrf.mxu0
    %346 = vdwg.mxu0
    %v347 = vld [vmem:[#allocation2] sm:$0xf]
    %v348 = vld [vmem:[#allocation2 + $0x4] sm:$0xf]
    %350 = vrot.lane.b32.xlu0 %v347, 126
    %v351 = vpop.permute.xlu0 %350
    %v353 = vsel %vm46, %v36, 0
    %v355 = vsel %vm50, %v351, 0
    %357 = vmatprep.subr.mxu0 0.0
    %358 = vmatpush1.msra.mxu0 0.0
    %359 = vmatprep.subr.mxu0 0.0
    %360 = vmatpush1.msra.mxu0 0.0
    %361 = vmatprep.subr.mxu0 0.0
    %362 = vmatpush1.msra.mxu0 0.0
    %363 = vmatprep.subr.mxu0 0.0
    %364 = vmatpush1.msra.mxu0 0.0
    %365 = vmatprep.subr.mxu0 0.0
    %366 = vmatpush1.msra.mxu0 0.0
    %367 = vmatprep.subr.mxu0 0.0
    %368 = vmatpush1.msra.mxu0 0.0
    %369 = vmatprep.subr.mxu0 0.0
    %370 = vmatpush1.msra.mxu0 0.0
    %371 = vmatprep.subr.mxu0 0.0
    %372 = vmatpush1.msra.mxu0 0.0
    %373 = vmatprep.subr.mxu0 0.0
    %374 = vmatpush1.msra.mxu0 0.0
    %375 = vmatprep.subr.mxu0 0.0
    %376 = vmatpush1.msra.mxu0 0.0
    %377 = vmatprep.subr.mxu0 0.0
    %378 = vmatpush1.msra.mxu0 0.0
    %379 = vmatprep.subr.mxu0 0.0
    %380 = vmatpush1.msra.mxu0 0.0
    %381 = vmatprep.subr.mxu0 0.0
    %382 = vmatpush1.msra.mxu0 0.0
    %383 = vmatprep.subr.mxu0 0.0
    %384 = vmatpush1.msra.mxu0 0.0
    %385 = vmatprep.subr.mxu0 0.0
    %386 = vmatpush1.msra.mxu0 0.0
    %387 = vmatprep.subr.mxu0 0.0
    %388 = vmatpush1.msra.mxu0 %v355
    %389 = vmatprep.subr.mxu0 0.0
    %390 = vmatpush2.msra.mxu0 0.0
    %391 = vmatprep.subr.mxu0 0.0
    %392 = vmatpush2.msra.mxu0 0.0
    %393 = vmatprep.subr.mxu0 0.0
    %394 = vmatpush2.msra.mxu0 0.0
    %395 = vmatprep.subr.mxu0 0.0
    %396 = vmatpush2.msra.mxu0 0.0
    %397 = vmatprep.subr.mxu0 0.0
    %398 = vmatpush2.msra.mxu0 0.0
    %399 = vmatprep.subr.mxu0 0.0
    %400 = vmatpush2.msra.mxu0 0.0
    %401 = vmatprep.subr.mxu0 0.0
    %402 = vmatpush2.msra.mxu0 0.0
    %403 = vmatprep.subr.mxu0 0.0
    %404 = vmatpush2.msra.mxu0 0.0
    %405 = vmatprep.subr.mxu0 0.0
    %406 = vmatpush2.msra.mxu0 0.0
    %407 = vmatprep.subr.mxu0 0.0
    %408 = vmatpush2.msra.mxu0 0.0
    %409 = vmatprep.subr.mxu0 0.0
    %410 = vmatpush2.msra.mxu0 0.0
    %411 = vmatprep.subr.mxu0 0.0
    %412 = vmatpush2.msra.mxu0 0.0
    %413 = vmatprep.subr.mxu0 0.0
    %414 = vmatpush2.msra.mxu0 0.0
    %415 = vmatprep.subr.mxu0 0.0
    %416 = vmatpush2.msra.mxu0 0.0
    %417 = vmatprep.subr.mxu0 0.0
    %418 = vmatpush2.msra.mxu0 0.0
    %419 = vmatprep.subr.mxu0 0.0
    %420 = vmatpush2.msra.mxu0 0.0
    %421 = vmatprep.mubr.f32.mxu0 0.0
    %422 = vmatmul.mubr.f32.gmra.mxu0 %v353
    %v423 = vpop.f32.mrf.mxu0
    %v424 = vadd.f32 0.0, %v423
    %v425 = vpop.f32.mrf.mxu0
    %426 = vdwg.mxu0
    %428 = vrot.lane.b32.xlu0 %v348, 126
    %v429 = vpop.permute.xlu0 %428
    %v430 = vsel %vm50, %v429, 0
    %432 = vmatprep.subr.mxu0 0.0
    %433 = vmatpush1.msra.mxu0 0.0
    %434 = vmatprep.subr.mxu0 0.0
    %435 = vmatpush1.msra.mxu0 0.0
    %436 = vmatprep.subr.mxu0 0.0
    %437 = vmatpush1.msra.mxu0 0.0
    %438 = vmatprep.subr.mxu0 0.0
    %439 = vmatpush1.msra.mxu0 0.0
    %440 = vmatprep.subr.mxu0 0.0
    %441 = vmatpush1.msra.mxu0 0.0
    %442 = vmatprep.subr.mxu0 0.0
    %443 = vmatpush1.msra.mxu0 0.0
    %444 = vmatprep.subr.mxu0 0.0
    %445 = vmatpush1.msra.mxu0 0.0
    %446 = vmatprep.subr.mxu0 0.0
    %447 = vmatpush1.msra.mxu0 0.0
    %448 = vmatprep.subr.mxu0 0.0
    %449 = vmatpush1.msra.mxu0 0.0
    %450 = vmatprep.subr.mxu0 0.0
    %451 = vmatpush1.msra.mxu0 0.0
    %452 = vmatprep.subr.mxu0 0.0
    %453 = vmatpush1.msra.mxu0 0.0
    %454 = vmatprep.subr.mxu0 0.0
    %455 = vmatpush1.msra.mxu0 0.0
    %456 = vmatprep.subr.mxu0 0.0
    %457 = vmatpush1.msra.mxu0 0.0
    %458 = vmatprep.subr.mxu0 0.0
    %459 = vmatpush1.msra.mxu0 0.0
    %460 = vmatprep.subr.mxu0 0.0
    %461 = vmatpush1.msra.mxu0 0.0
    %462 = vmatprep.subr.mxu0 0.0
    %463 = vmatpush1.msra.mxu0 %v430
    %464 = vmatprep.subr.mxu0 0.0
    %465 = vmatpush2.msra.mxu0 0.0
    %466 = vmatprep.subr.mxu0 0.0
    %467 = vmatpush2.msra.mxu0 0.0
    %468 = vmatprep.subr.mxu0 0.0
    %469 = vmatpush2.msra.mxu0 0.0
    %470 = vmatprep.subr.mxu0 0.0
    %471 = vmatpush2.msra.mxu0 0.0
    %472 = vmatprep.subr.mxu0 0.0
    %473 = vmatpush2.msra.mxu0 0.0
    %474 = vmatprep.subr.mxu0 0.0
    %475 = vmatpush2.msra.mxu0 0.0
    %476 = vmatprep.subr.mxu0 0.0
    %477 = vmatpush2.msra.mxu0 0.0
    %478 = vmatprep.subr.mxu0 0.0
    %479 = vmatpush2.msra.mxu0 0.0
    %480 = vmatprep.subr.mxu0 0.0
    %481 = vmatpush2.msra.mxu0 0.0
    %482 = vmatprep.subr.mxu0 0.0
    %483 = vmatpush2.msra.mxu0 0.0
    %484 = vmatprep.subr.mxu0 0.0
    %485 = vmatpush2.msra.mxu0 0.0
    %486 = vmatprep.subr.mxu0 0.0
    %487 = vmatpush2.msra.mxu0 0.0
    %488 = vmatprep.subr.mxu0 0.0
    %489 = vmatpush2.msra.mxu0 0.0
    %490 = vmatprep.subr.mxu0 0.0
    %491 = vmatpush2.msra.mxu0 0.0
    %492 = vmatprep.subr.mxu0 0.0
    %493 = vmatpush2.msra.mxu0 0.0
    %494 = vmatprep.subr.mxu0 0.0
    %495 = vmatpush2.msra.mxu0 0.0
    %496 = vmatprep.mubr.f32.mxu0 0.0
    %497 = vmatmul.mubr.f32.gmra.mxu0 %v353
    %v498 = vpop.f32.mrf.mxu0
    %v499 = vadd.f32 0.0, %v498
    %v500 = vpop.f32.mrf.mxu0
    %501 = vdwg.mxu0
    %v502 = vadd.f32 %v271, %v424
    %v503 = vadd.f32 %v344, %v499
    %v504 = vld [vmem:[#allocation2] sm:$0xf]
    %v505 = vld [vmem:[#allocation2 + $0x4] sm:$0xf]
    %507 = vrot.lane.b32.xlu0 %v504, 125
    %v508 = vpop.permute.xlu0 %507
    %v510 = vsel %vm46, %v37, 0
    %v512 = vsel %vm50, %v508, 0
    %514 = vmatprep.subr.mxu0 0.0
    %515 = vmatpush1.msra.mxu0 0.0
    %516 = vmatprep.subr.mxu0 0.0
    %517 = vmatpush1.msra.mxu0 0.0
    %518 = vmatprep.subr.mxu0 0.0
    %519 = vmatpush1.msra.mxu0 0.0
    %520 = vmatprep.subr.mxu0 0.0
    %521 = vmatpush1.msra.mxu0 0.0
    %522 = vmatprep.subr.mxu0 0.0
    %523 = vmatpush1.msra.mxu0 0.0
    %524 = vmatprep.subr.mxu0 0.0
    %525 = vmatpush1.msra.mxu0 0.0
    %526 = vmatprep.subr.mxu0 0.0
    %527 = vmatpush1.msra.mxu0 0.0
    %528 = vmatprep.subr.mxu0 0.0
    %529 = vmatpush1.msra.mxu0 0.0
    %530 = vmatprep.subr.mxu0 0.0
    %531 = vmatpush1.msra.mxu0 0.0
    %532 = vmatprep.subr.mxu0 0.0
    %533 = vmatpush1.msra.mxu0 0.0
    %534 = vmatprep.subr.mxu0 0.0
    %535 = vmatpush1.msra.mxu0 0.0
    %536 = vmatprep.subr.mxu0 0.0
    %537 = vmatpush1.msra.mxu0 0.0
    %538 = vmatprep.subr.mxu0 0.0
    %539 = vmatpush1.msra.mxu0 0.0
    %540 = vmatprep.subr.mxu0 0.0
    %541 = vmatpush1.msra.mxu0 0.0
    %542 = vmatprep.subr.mxu0 0.0
    %543 = vmatpush1.msra.mxu0 0.0
    %544 = vmatprep.subr.mxu0 0.0
    %545 = vmatpush1.msra.mxu0 %v512
    %546 = vmatprep.subr.mxu0 0.0
    %547 = vmatpush2.msra.mxu0 0.0
    %548 = vmatprep.subr.mxu0 0.0
    %549 = vmatpush2.msra.mxu0 0.0
    %550 = vmatprep.subr.mxu0 0.0
    %551 = vmatpush2.msra.mxu0 0.0
    %552 = vmatprep.subr.mxu0 0.0
    %553 = vmatpush2.msra.mxu0 0.0
    %554 = vmatprep.subr.mxu0 0.0
    %555 = vmatpush2.msra.mxu0 0.0
    %556 = vmatprep.subr.mxu0 0.0
    %557 = vmatpush2.msra.mxu0 0.0
    %558 = vmatprep.subr.mxu0 0.0
    %559 = vmatpush2.msra.mxu0 0.0
    %560 = vmatprep.subr.mxu0 0.0
    %561 = vmatpush2.msra.mxu0 0.0
    %562 = vmatprep.subr.mxu0 0.0
    %563 = vmatpush2.msra.mxu0 0.0
    %564 = vmatprep.subr.mxu0 0.0
    %565 = vmatpush2.msra.mxu0 0.0
    %566 = vmatprep.subr.mxu0 0.0
    %567 = vmatpush2.msra.mxu0 0.0
    %568 = vmatprep.subr.mxu0 0.0
    %569 = vmatpush2.msra.mxu0 0.0
    %570 = vmatprep.subr.mxu0 0.0
    %571 = vmatpush2.msra.mxu0 0.0
    %572 = vmatprep.subr.mxu0 0.0
    %573 = vmatpush2.msra.mxu0 0.0
    %574 = vmatprep.subr.mxu0 0.0
    %575 = vmatpush2.msra.mxu0 0.0
    %576 = vmatprep.subr.mxu0 0.0
    %577 = vmatpush2.msra.mxu0 0.0
    %578 = vmatprep.mubr.f32.mxu0 0.0
    %579 = vmatmul.mubr.f32.gmra.mxu0 %v510
    %v580 = vpop.f32.mrf.mxu0
    %v581 = vadd.f32 0.0, %v580
    %v582 = vpop.f32.mrf.mxu0
    %583 = vdwg.mxu0
    %585 = vrot.lane.b32.xlu0 %v505, 125
    %v586 = vpop.permute.xlu0 %585
    %v587 = vsel %vm50, %v586, 0
    %589 = vmatprep.subr.mxu0 0.0
    %590 = vmatpush1.msra.mxu0 0.0
    %591 = vmatprep.subr.mxu0 0.0
    %592 = vmatpush1.msra.mxu0 0.0
    %593 = vmatprep.subr.mxu0 0.0
    %594 = vmatpush1.msra.mxu0 0.0
    %595 = vmatprep.subr.mxu0 0.0
    %596 = vmatpush1.msra.mxu0 0.0
    %597 = vmatprep.subr.mxu0 0.0
    %598 = vmatpush1.msra.mxu0 0.0
    %599 = vmatprep.subr.mxu0 0.0
    %600 = vmatpush1.msra.mxu0 0.0
    %601 = vmatprep.subr.mxu0 0.0
    %602 = vmatpush1.msra.mxu0 0.0
    %603 = vmatprep.subr.mxu0 0.0
    %604 = vmatpush1.msra.mxu0 0.0
    %605 = vmatprep.subr.mxu0 0.0
    %606 = vmatpush1.msra.mxu0 0.0
    %607 = vmatprep.subr.mxu0 0.0
    %608 = vmatpush1.msra.mxu0 0.0
    %609 = vmatprep.subr.mxu0 0.0
    %610 = vmatpush1.msra.mxu0 0.0
    %611 = vmatprep.subr.mxu0 0.0
    %612 = vmatpush1.msra.mxu0 0.0
    %613 = vmatprep.subr.mxu0 0.0
    %614 = vmatpush1.msra.mxu0 0.0
    %615 = vmatprep.subr.mxu0 0.0
    %616 = vmatpush1.msra.mxu0 0.0
    %617 = vmatprep.subr.mxu0 0.0
    %618 = vmatpush1.msra.mxu0 0.0
    %619 = vmatprep.subr.mxu0 0.0
    %620 = vmatpush1.msra.mxu0 %v587
    %621 = vmatprep.subr.mxu0 0.0
    %622 = vmatpush2.msra.mxu0 0.0
    %623 = vmatprep.subr.mxu0 0.0
    %624 = vmatpush2.msra.mxu0 0.0
    %625 = vmatprep.subr.mxu0 0.0
    %626 = vmatpush2.msra.mxu0 0.0
    %627 = vmatprep.subr.mxu0 0.0
    %628 = vmatpush2.msra.mxu0 0.0
    %629 = vmatprep.subr.mxu0 0.0
    %630 = vmatpush2.msra.mxu0 0.0
    %631 = vmatprep.subr.mxu0 0.0
    %632 = vmatpush2.msra.mxu0 0.0
    %633 = vmatprep.subr.mxu0 0.0
    %634 = vmatpush2.msra.mxu0 0.0
    %635 = vmatprep.subr.mxu0 0.0
    %636 = vmatpush2.msra.mxu0 0.0
    %637 = vmatprep.subr.mxu0 0.0
    %638 = vmatpush2.msra.mxu0 0.0
    %639 = vmatprep.subr.mxu0 0.0
    %640 = vmatpush2.msra.mxu0 0.0
    %641 = vmatprep.subr.mxu0 0.0
    %642 = vmatpush2.msra.mxu0 0.0
    %643 = vmatprep.subr.mxu0 0.0
    %644 = vmatpush2.msra.mxu0 0.0
    %645 = vmatprep.subr.mxu0 0.0
    %646 = vmatpush2.msra.mxu0 0.0
    %647 = vmatprep.subr.mxu0 0.0
    %648 = vmatpush2.msra.mxu0 0.0
    %649 = vmatprep.subr.mxu0 0.0
    %650 = vmatpush2.msra.mxu0 0.0
    %651 = vmatprep.subr.mxu0 0.0
    %652 = vmatpush2.msra.mxu0 0.0
    %653 = vmatprep.mubr.f32.mxu0 0.0
    %654 = vmatmul.mubr.f32.gmra.mxu0 %v510
    %v655 = vpop.f32.mrf.mxu0
    %v656 = vadd.f32 0.0, %v655
    %v657 = vpop.f32.mrf.mxu0
    %658 = vdwg.mxu0
    %v659 = vadd.f32 %v502, %v581
    %v660 = vadd.f32 %v503, %v656
    %v661 = vld [vmem:[#allocation2] sm:$0xf]
    %v662 = vld [vmem:[#allocation2 + $0x4] sm:$0xf]
    %664 = vrot.lane.b32.xlu0 %v661, 124
    %v665 = vpop.permute.xlu0 %664
    %v667 = vsel %vm46, %v38, 0
    %v669 = vsel %vm50, %v665, 0
    %671 = vmatprep.subr.mxu0 0.0
    %672 = vmatpush1.msra.mxu0 0.0
    %673 = vmatprep.subr.mxu0 0.0
    %674 = vmatpush1.msra.mxu0 0.0
    %675 = vmatprep.subr.mxu0 0.0
    %676 = vmatpush1.msra.mxu0 0.0
    %677 = vmatprep.subr.mxu0 0.0
    %678 = vmatpush1.msra.mxu0 0.0
    %679 = vmatprep.subr.mxu0 0.0
    %680 = vmatpush1.msra.mxu0 0.0
    %681 = vmatprep.subr.mxu0 0.0
    %682 = vmatpush1.msra.mxu0 0.0
    %683 = vmatprep.subr.mxu0 0.0
    %684 = vmatpush1.msra.mxu0 0.0
    %685 = vmatprep.subr.mxu0 0.0
    %686 = vmatpush1.msra.mxu0 0.0
    %687 = vmatprep.subr.mxu0 0.0
    %688 = vmatpush1.msra.mxu0 0.0
    %689 = vmatprep.subr.mxu0 0.0
    %690 = vmatpush1.msra.mxu0 0.0
    %691 = vmatprep.subr.mxu0 0.0
    %692 = vmatpush1.msra.mxu0 0.0
    %693 = vmatprep.subr.mxu0 0.0
    %694 = vmatpush1.msra.mxu0 0.0
    %695 = vmatprep.subr.mxu0 0.0
    %696 = vmatpush1.msra.mxu0 0.0
    %697 = vmatprep.subr.mxu0 0.0
    %698 = vmatpush1.msra.mxu0 0.0
    %699 = vmatprep.subr.mxu0 0.0
    %700 = vmatpush1.msra.mxu0 0.0
    %701 = vmatprep.subr.mxu0 0.0
    %702 = vmatpush1.msra.mxu0 %v669
    %703 = vmatprep.subr.mxu0 0.0
    %704 = vmatpush2.msra.mxu0 0.0
    %705 = vmatprep.subr.mxu0 0.0
    %706 = vmatpush2.msra.mxu0 0.0
    %707 = vmatprep.subr.mxu0 0.0
    %708 = vmatpush2.msra.mxu0 0.0
    %709 = vmatprep.subr.mxu0 0.0
    %710 = vmatpush2.msra.mxu0 0.0
    %711 = vmatprep.subr.mxu0 0.0
    %712 = vmatpush2.msra.mxu0 0.0
    %713 = vmatprep.subr.mxu0 0.0
    %714 = vmatpush2.msra.mxu0 0.0
    %715 = vmatprep.subr.mxu0 0.0
    %716 = vmatpush2.msra.mxu0 0.0
    %717 = vmatprep.subr.mxu0 0.0
    %718 = vmatpush2.msra.mxu0 0.0
    %719 = vmatprep.subr.mxu0 0.0
    %720 = vmatpush2.msra.mxu0 0.0
    %721 = vmatprep.subr.mxu0 0.0
    %722 = vmatpush2.msra.mxu0 0.0
    %723 = vmatprep.subr.mxu0 0.0
    %724 = vmatpush2.msra.mxu0 0.0
    %725 = vmatprep.subr.mxu0 0.0
    %726 = vmatpush2.msra.mxu0 0.0
    %727 = vmatprep.subr.mxu0 0.0
    %728 = vmatpush2.msra.mxu0 0.0
    %729 = vmatprep.subr.mxu0 0.0
    %730 = vmatpush2.msra.mxu0 0.0
    %731 = vmatprep.subr.mxu0 0.0
    %732 = vmatpush2.msra.mxu0 0.0
    %733 = vmatprep.subr.mxu0 0.0
    %734 = vmatpush2.msra.mxu0 0.0
    %735 = vmatprep.mubr.f32.mxu0 0.0
    %736 = vmatmul.mubr.f32.gmra.mxu0 %v667
    %v737 = vpop.f32.mrf.mxu0
    %v738 = vadd.f32 0.0, %v737
    %v739 = vpop.f32.mrf.mxu0
    %740 = vdwg.mxu0
    %742 = vrot.lane.b32.xlu0 %v662, 124
    %v743 = vpop.permute.xlu0 %742
    %v744 = vsel %vm50, %v743, 0
    %746 = vmatprep.subr.mxu0 0.0
    %747 = vmatpush1.msra.mxu0 0.0
    %748 = vmatprep.subr.mxu0 0.0
    %749 = vmatpush1.msra.mxu0 0.0
    %750 = vmatprep.subr.mxu0 0.0
    %751 = vmatpush1.msra.mxu0 0.0
    %752 = vmatprep.subr.mxu0 0.0
    %753 = vmatpush1.msra.mxu0 0.0
    %754 = vmatprep.subr.mxu0 0.0
    %755 = vmatpush1.msra.mxu0 0.0
    %756 = vmatprep.subr.mxu0 0.0
    %757 = vmatpush1.msra.mxu0 0.0
    %758 = vmatprep.subr.mxu0 0.0
    %759 = vmatpush1.msra.mxu0 0.0
    %760 = vmatprep.subr.mxu0 0.0
    %761 = vmatpush1.msra.mxu0 0.0
    %762 = vmatprep.subr.mxu0 0.0
    %763 = vmatpush1.msra.mxu0 0.0
    %764 = vmatprep.subr.mxu0 0.0
    %765 = vmatpush1.msra.mxu0 0.0
    %766 = vmatprep.subr.mxu0 0.0
    %767 = vmatpush1.msra.mxu0 0.0
    %768 = vmatprep.subr.mxu0 0.0
    %769 = vmatpush1.msra.mxu0 0.0
    %770 = vmatprep.subr.mxu0 0.0
    %771 = vmatpush1.msra.mxu0 0.0
    %772 = vmatprep.subr.mxu0 0.0
    %773 = vmatpush1.msra.mxu0 0.0
    %774 = vmatprep.subr.mxu0 0.0
    %775 = vmatpush1.msra.mxu0 0.0
    %776 = vmatprep.subr.mxu0 0.0
    %777 = vmatpush1.msra.mxu0 %v744
    %778 = vmatprep.subr.mxu0 0.0
    %779 = vmatpush2.msra.mxu0 0.0
    %780 = vmatprep.subr.mxu0 0.0
    %781 = vmatpush2.msra.mxu0 0.0
    %782 = vmatprep.subr.mxu0 0.0
    %783 = vmatpush2.msra.mxu0 0.0
    %784 = vmatprep.subr.mxu0 0.0
    %785 = vmatpush2.msra.mxu0 0.0
    %786 = vmatprep.subr.mxu0 0.0
    %787 = vmatpush2.msra.mxu0 0.0
    %788 = vmatprep.subr.mxu0 0.0
    %789 = vmatpush2.msra.mxu0 0.0
    %790 = vmatprep.subr.mxu0 0.0
    %791 = vmatpush2.msra.mxu0 0.0
    %792 = vmatprep.subr.mxu0 0.0
    %793 = vmatpush2.msra.mxu0 0.0
    %794 = vmatprep.subr.mxu0 0.0
    %795 = vmatpush2.msra.mxu0 0.0
    %796 = vmatprep.subr.mxu0 0.0
    %797 = vmatpush2.msra.mxu0 0.0
    %798 = vmatprep.subr.mxu0 0.0
    %799 = vmatpush2.msra.mxu0 0.0
    %800 = vmatprep.subr.mxu0 0.0
    %801 = vmatpush2.msra.mxu0 0.0
    %802 = vmatprep.subr.mxu0 0.0
    %803 = vmatpush2.msra.mxu0 0.0
    %804 = vmatprep.subr.mxu0 0.0
    %805 = vmatpush2.msra.mxu0 0.0
    %806 = vmatprep.subr.mxu0 0.0
    %807 = vmatpush2.msra.mxu0 0.0
    %808 = vmatprep.subr.mxu0 0.0
    %809 = vmatpush2.msra.mxu0 0.0
    %810 = vmatprep.mubr.f32.mxu0 0.0
    %811 = vmatmul.mubr.f32.gmra.mxu0 %v667
    %v812 = vpop.f32.mrf.mxu0
    %v813 = vadd.f32 0.0, %v812
    %v814 = vpop.f32.mrf.mxu0
    %815 = vdwg.mxu0
    %v816 = vadd.f32 %v659, %v738
    %v817 = vadd.f32 %v660, %v813
    %vm818 = vcmask 130048
    %v819 = vsel %vm818, %v816, 0.0
    %v820 = vsel %vm818, %v817, 0.0
    %v821 = vadd.f32 %v819, %v820
    %822 = vadd.xlane.f32.xlu0 %v821
    %v823 = vpop.xlane.xlu0 %822
    %v824 = vmul.f32 %v816, %v816
    %v825 = vmul.f32 %v817, %v817
    %v826 = vsel %vm818, %v824, 0.0
    %v827 = vsel %vm818, %v825, 0.0
    %v828 = vadd.f32 %v826, %v827
    %829 = vadd.xlane.f32.xlu0 %v828
    %v830 = vpop.xlane.xlu0 %829
    %v831 = vmul.f32 %v823, 0.03125
    %v832 = vmul.f32 %v830, 0.03125
    %v833 = vmul.f32 %v831, %v831
    %v834 = vsub.f32 %v832, %v833
    %v835 = vmax.f32 %v834, 0.0
    %v836 = vld [vmem:[%s2] sm:$0xff]
    %s837 = scalar_lea.vmem %s2, 8
    %v838 = vld [vmem:[%s837] sm:$0xff]
    %v839 = vadd.f32 %v835, 1e-05
    %v840 = vrsqrt.pop %v839
    %v841 = vmul.f32 %v836, %v840
    %v842 = vmul.f32 %v831, %v841
    %v843 = vsub.f32 %v838, %v842
    %845 = vset.pattern.permute.xlu0 0
    %846 = vperm.xlu0 %845, %v841
    %v847 = vpop.permute.xlu0 %846
    %v849 = vmul.f32 %v816, %v847
    %v850 = vmul.f32 %v817, %v847
    %852 = vset.pattern.permute.xlu0 0
    %853 = vperm.xlu0 %852, %v843
    %v854 = vpop.permute.xlu0 %853
    %v856 = vadd.f32 %v849, %v854
    %v857 = vadd.f32 %v850, %v854
    %v858 = vmax.f32 %v856, 0.0
    %v859 = vmax.f32 %v857, 0.0
    %860 = vst.msk [vmem:[#allocation3] sm:$0xff] %vm818, %v858
    %861 = vst.msk [vmem:[#allocation3 + $0x8] sm:$0xff] %vm818, %v859
    // Predicated region
    $region14: #{tpu_custom_call.1} parent=1 // pred_check
      _
    $region15: #{tpu_custom_call.1} parent=1 // pred_check_branch
      %863 = sbr.rel (0) target = $region17
    $region16: #{tpu_custom_call.1} parent=1 // pred_region
      %s865 = ssub.s32 256, 256
      %866 = vsyncadd [#allocation4], %s865
      %s867 = sshll.u32 [#allocation3], 4
      %s868 = int_to_ptr.vmem [resolvable:$true] %s867
      %873 = dma.vmem_to_hbm [thread:$0]  %s868, 256, %s3, [#allocation4], 128, 128, 8
    $region17: #{tpu_custom_call.1} parent=1 // pred_fallthru
      _
    // Predicated region
    $region18: #{tpu_custom_call.1} parent=1 // pred_check
      _
    $region19: #{tpu_custom_call.1} parent=1 // pred_check_branch
      %875 = sbr.rel (0) target = $region21
    $region20: #{tpu_custom_call.1} parent=1 // pred_region
      %876 = dma.done [#allocation4], 256
    $region21: #{tpu_custom_call.1} parent=1 // pred_fallthru
      _
    %877 = vsyncpa [#allocation4], 1

</llo_original>
